<compile_context>
chip_gen: v6e
topology: v6e:2x2x1
jax: 0.10.0
libtpu: 0.0.40
codegen_flags: <defaults>
</compile_context>

<pallas_src>
import functools

import jax
import jax.numpy as jnp
from jax.experimental import pallas as pl
from jax.experimental.pallas import tpu as pltpu


def _ru(x, m):
    return ((x + m - 1) // m) * m


GROWTH = 32
BLOCK_CONFIG = (6, 12, 24, 16)
NUM_INIT_FEATURES = 64
BN_SIZE = 4
NUM_CLASSES = 2  # replaced classifier head (empty / occupied)


# ----------------------------------------------------------------------------
# Pallas kernel 1: single-shot fused matmul (optional BN+ReLU prologue/epilogue)
# ----------------------------------------------------------------------------
def _fused_mm_kernel(a_ref, b_ref, *rest, has_pre, has_post):
    """One full-K matmul per (M, N) tile, f32 accumulation inside the dot.

    Optional BN+ReLU prologue on the A tile (per-K-column scale/shift, f32 math,
    bf16 back to the MXU) and BN+ReLU epilogue on the f32 result before the
    single downcast + store.
    """
    idx = 0
    pre_s = pre_b = post_s = post_b = None
    if has_pre:
        pre_s, pre_b = rest[0], rest[1]
        idx = 2
    if has_post:
        post_s, post_b = rest[idx], rest[idx + 1]
        idx += 2
    o_ref = rest[idx]

    a = a_ref[...]
    if has_pre:
        a = jnp.maximum(a.astype(jnp.float32) * pre_s[...] + pre_b[...], 0.0)
        a = a.astype(jnp.bfloat16)
    r = jnp.dot(a, b_ref[...], preferred_element_type=jnp.float32)
    if has_post:
        r = jnp.maximum(r * post_s[...] + post_b[...], 0.0)
    o_ref[...] = r.astype(o_ref.dtype)


def fused_matmul(a, b, pre=None, post=None, out_dtype=jnp.bfloat16):
    """(M, Ca) @ (K, N) -> (M, N), with Ca >= K.

    Only the first K columns of `a` are read (full-K A block), so the caller never
    slices / pads activations.  `pre` / `post` are optional (scale, shift) f32
    pairs of shape (1, K) / (1, N) applied as BN+ReLU prologue / epilogue.
    Inputs bf16, accumulation f32, output `out_dtype`.
    """
    M, Ca = a.shape
    K, N = b.shape
    assert Ca >= K and K % 128 == 0 and M % 8 == 0 and N % 128 == 0

    if M % 256 == 0:
        tm = 256
    elif M >= 16 and (M // 2) % 8 == 0:
        tm = M // 2            # >=2 parallel M blocks: keeps both v7x TCs busy
    else:
        tm = M
    tn = 256 if N % 256 == 0 else 128
    grid = (M // tm, N // tn)

    has_pre = pre is not None
    has_post = post is not None

    in_specs = [pl.BlockSpec((tm, K), lambda i, j: (i, 0)),
                pl.BlockSpec((K, tn), lambda i, j: (0, j))]
    args = [a, b]
    if has_pre:
        in_specs += [pl.BlockSpec((1, K), lambda i, j: (0, 0)),
                     pl.BlockSpec((1, K), lambda i, j: (0, 0))]
        args += [pre[0], pre[1]]
    if has_post:
        in_specs += [pl.BlockSpec((1, tn), lambda i, j: (0, j)),
                     pl.BlockSpec((1, tn), lambda i, j: (0, j))]
        args += [post[0], post[1]]

    kernel = functools.partial(_fused_mm_kernel, has_pre=has_pre, has_post=has_post)
    return pl.pallas_call(
        kernel,
        out_shape=jax.ShapeDtypeStruct((M, N), out_dtype),
        grid=grid,
        in_specs=in_specs,
        out_specs=pl.BlockSpec((tm, tn), lambda i, j: (i, j)),
        compiler_params=pltpu.CompilerParams(
            dimension_semantics=("parallel", "parallel")),
    )(*args)


# ----------------------------------------------------------------------------
# Pallas kernel 2: 3x3 "same" convolution as 9 shifted-row matmuls, all in VMEM
# ----------------------------------------------------------------------------
def _conv3x3_kernel(hp_ref, w_ref, o_ref, *, tap_offs, tm):
    """hp_ref: (R_ext, C) bf16 -- spatially padded, row-flattened activation with
    `guard` zero rows before/after, fully VMEM resident.  w_ref: (9*C, Nout) bf16.
    o_ref: (R_pad, Nout).  Output row r accumulates the 9 taps read at the
    statically shifted rows r + tap_offs[t]."""
    c = w_ref.shape[0] // 9
    kn = w_ref.shape[1]
    r_pad = o_ref.shape[0]
    for rb in range(r_pad // tm):               # static unrolled row blocks
        base = rb * tm
        acc = jnp.zeros((tm, kn), jnp.float32)
        for t, off in enumerate(tap_offs):      # 9 static taps
            a = hp_ref[pl.ds(base + off, tm), :]
            acc = acc + jnp.dot(a, w_ref[pl.ds(t * c, c), :],
                                preferred_element_type=jnp.float32)
        o_ref[pl.ds(base, tm), :] = acc.astype(o_ref.dtype)


def conv3x3_same(h, w2):
    """h: (N,H,W,C) bf16 with C % 128 == 0; w2: (9*C, Nout) bf16 with Nout % 128 == 0.
    Returns the 3x3 stride-1 pad-1 convolution, shape (N,H,W,Nout) bf16."""
    N, H, W, C = h.shape
    KN = w2.shape[1]
    Hp, Wp = H + 2, W + 2
    R = N * Hp * Wp
    guard = Wp + 1
    tm = 128 if R >= 128 else _ru(R, 8)
    r_pad = _ru(R, tm)

    # spatial zero pad, flatten (n,y,x) -> row, add guard zero rows front/back.
    hp = jnp.pad(h, ((0, 0), (1, 1), (1, 1), (0, 0))).reshape(R, C)
    hp = jnp.pad(hp, ((guard, (r_pad - R) + guard), (0, 0)))

    tap_offs = tuple(guard + dy * Wp + dx
                     for dy in (-1, 0, 1) for dx in (-1, 0, 1))
    kernel = functools.partial(_conv3x3_kernel, tap_offs=tap_offs, tm=tm)
    out = pl.pallas_call(
        kernel,
        out_shape=jax.ShapeDtypeStruct((r_pad, KN), jnp.bfloat16),
    )(hp, w2)
    # keep interior spatial rows only (garbage rows at pad positions are dropped)
    return out[:R].reshape(N, Hp, Wp, KN)[:, 1:H + 1, 1:W + 1, :]


# ----------------------------------------------------------------------------
# Plain-JAX glue: stem im2col, pooling
# ----------------------------------------------------------------------------
def im2col(x, kh, kw, stride, pad, k_pad=None):
    """x: (N,H,W,C) -> (N*Ho*Wo, kh*kw*C [padded to k_pad]) patches, row order
    (kh, kw, C).  The zero K-pad is folded into the single concatenate."""
    N, H, W, C = x.shape
    Ho = (H + 2 * pad - kh) // stride + 1
    Wo = (W + 2 * pad - kw) // stride + 1
    xp = jnp.pad(x, ((0, 0), (pad, pad), (pad, pad), (0, 0)))
    cols = []
    for i in range(kh):
        for j in range(kw):
            cols.append(xp[:, i:i + stride * (Ho - 1) + 1:stride,
                           j:j + stride * (Wo - 1) + 1:stride, :])
    k = kh * kw * C
    if k_pad is not None and k_pad > k:
        cols.append(jnp.zeros((N, Ho, Wo, k_pad - k), x.dtype))
    patches = jnp.concatenate(cols, axis=-1)
    return patches.reshape(N * Ho * Wo, patches.shape[-1]), Ho, Wo


def maxpool(x, k, s, p):
    # TODO(synk): pooling done with lax.reduce_window (XLA glue), not a Pallas kernel.
    init = jnp.array(-jnp.inf, dtype=x.dtype)
    return jax.lax.reduce_window(
        x, init, jax.lax.max,
        window_dimensions=(1, k, k, 1), window_strides=(1, s, s, 1),
        padding=((0, 0), (p, p), (p, p), (0, 0)))


def avgpool2(x):
    s = jax.lax.reduce_window(
        x.astype(jnp.float32), 0.0, jax.lax.add,
        window_dimensions=(1, 2, 2, 1), window_strides=(1, 2, 2, 1),
        padding="VALID")
    return (s * 0.25).astype(jnp.bfloat16)


# ----------------------------------------------------------------------------
# Deterministic parameter construction (synthetic, not a checkpoint).
# Weights are padded + cast to bf16 once here; BN is folded to (scale, shift) f32
# and zero-padded so padded lanes contribute exactly 0 inside the fused kernels.
# ----------------------------------------------------------------------------
class ParamGen:
    def __init__(self, key):
        self.key = key

    def _next(self):
        self.key, sub = jax.random.split(self.key)
        return sub

    def conv(self, kh, kw, cin, cout, k_pad=None, n_pad=None):
        fan = kh * kw * cin
        w = jax.random.normal(self._next(), (kh * kw * cin, cout), jnp.float32)
        w = w * jnp.sqrt(2.0 / fan)
        if k_pad is not None and k_pad > w.shape[0]:
            w = jnp.pad(w, ((0, k_pad - w.shape[0]), (0, 0)))
        if n_pad is not None and n_pad > w.shape[1]:
            w = jnp.pad(w, ((0, 0), (0, n_pad - w.shape[1])))
        return w.astype(jnp.bfloat16)

    def bn(self, c, c_pad=None, eps=1e-5):
        gamma = 1.0 + 0.1 * jax.random.normal(self._next(), (c,), jnp.float32)
        beta = 0.1 * jax.random.normal(self._next(), (c,), jnp.float32)
        mean = 0.1 * jax.random.normal(self._next(), (c,), jnp.float32)
        var = 1.0 + 0.1 * jnp.abs(jax.random.normal(self._next(), (c,), jnp.float32))
        scale = gamma / jnp.sqrt(var + eps)
        shift = beta - mean * scale
        if c_pad is not None and c_pad > c:
            scale = jnp.pad(scale, (0, c_pad - c))
            shift = jnp.pad(shift, (0, c_pad - c))   # zero shift => relu(0)=0 in pads
        return scale.reshape(1, -1), shift.reshape(1, -1)

    def linear(self, cin, cout):
        w = jax.random.normal(self._next(), (cin, cout), jnp.float32) / jnp.sqrt(cin)
        b = 0.1 * jax.random.normal(self._next(), (cout,), jnp.float32)
        return w, b


def build_densenet121_params(key):
    pg = ParamGen(key)
    params = {
        # conv0: K padded 147->256, output lane-densified 64->128 (zero columns)
        "conv0": pg.conv(7, 7, 3, NUM_INIT_FEATURES,
                         k_pad=_ru(7 * 7 * 3, 256), n_pad=128),
        "norm0": pg.bn(NUM_INIT_FEATURES, c_pad=128),
        "blocks": [],
        "transitions": [],
    }
    num_features = NUM_INIT_FEATURES
    for bi, n_layers in enumerate(BLOCK_CONFIG):
        layers = []
        for li in range(n_layers):
            cin = num_features + li * GROWTH
            cin_p = _ru(cin, 256)                       # 256-deep K tiles (v6e/v7x)
            bn1_s, bn1_b = pg.bn(cin, c_pad=cin_p)
            bn2_s, bn2_b = pg.bn(BN_SIZE * GROWTH)      # 128, already lane aligned
            layers.append({
                "bn1_s": bn1_s, "bn1_b": bn1_b,
                "conv1": pg.conv(1, 1, cin, BN_SIZE * GROWTH, k_pad=cin_p),
                "bn2_s": bn2_s, "bn2_b": bn2_b,
                # conv2: 3x3, output lane-densified 32->128 (zero columns)
                "conv2": pg.conv(3, 3, BN_SIZE * GROWTH, GROWTH, n_pad=128),
            })
        params["blocks"].append(layers)
        num_features += n_layers * GROWTH
        if bi != len(BLOCK_CONFIG) - 1:
            bn_s, bn_b = pg.bn(num_features)
            params["transitions"].append({
                "bn_s": bn_s, "bn_b": bn_b,
                "conv": pg.conv(1, 1, num_features, num_features // 2),
            })
            num_features //= 2
    params["norm5"] = pg.bn(num_features)              # num_features == 1024
    params["fc_w"], params["fc_b"] = pg.linear(num_features, NUM_CLASSES)
    return params


# ----------------------------------------------------------------------------
# Jitted layer steps (one executable per distinct shape; glue fused with kernels)
# ----------------------------------------------------------------------------
@jax.jit
def _stem(x_nchw, w0, n0_s, n0_b):
    # NCHW -> NHWC bf16; conv 7x7 s2 p3 with fused BN+ReLU epilogue (128 lanes,
    # 64 valid); maxpool 3x3 s2 p1.
    x = jnp.transpose(x_nchw, (0, 2, 3, 1)).astype(jnp.bfloat16)
    N = x.shape[0]
    patches, Ho, Wo = im2col(x, 7, 7, 2, 3, k_pad=w0.shape[0])
    h = fused_matmul(patches, w0, post=(n0_s, n0_b))          # (M, 128) bf16
    h = h.reshape(N, Ho, Wo, -1)
    return maxpool(h, 3, 2, 1)


@functools.partial(jax.jit, donate_argnums=(0,))
def _dense_layer_step(buf, bn1_s, bn1_b, w1, bn2_s, bn2_b, w2, offset):
    """One DenseNet layer: BN1-ReLU-Conv1x1 with fused BN2-ReLU epilogue (one
    Pallas call) -> 9-tap in-VMEM 3x3 conv (one Pallas call) -> write 32 new
    channels into the donated block buffer."""
    N, H, W, C = buf.shape
    a = buf.reshape(N * H * W, C)
    h = fused_matmul(a, w1, pre=(bn1_s, bn1_b), post=(bn2_s, bn2_b))   # (M,128)
    h = h.reshape(N, H, W, -1)
    new = conv3x3_same(h, w2)[..., :GROWTH]                            # (N,H,W,32)
    # TODO(synk): alias buf into the conv kernel and store at pl.ds(offset, 32)
    #             in-kernel to avoid this lane-misaligned update.
    return jax.lax.dynamic_update_slice_in_dim(buf, new, offset, axis=3)


@jax.jit
def _transition_step(buf, bn_s, bn_b, w):
    N, H, W, C = buf.shape
    a = buf.reshape(N * H * W, C)
    h = fused_matmul(a, w, pre=(bn_s, bn_b))                 # bn+relu fused prologue
    return avgpool2(h.reshape(N, H, W, -1))


@jax.jit
def _tail(buf, n5_s, n5_b, fc_w, fc_b):
    # norm5 + ReLU + adaptive avg pool (1,1) + 1024->2 classifier: plain jnp on a
    # tiny (N*H*W, 1024) tensor -- a kernel launch here would be pure overhead.
    N, H, W, C = buf.shape
    x = jnp.maximum(buf.astype(jnp.float32) * n5_s.reshape(1, 1, 1, C)
                    + n5_b.reshape(1, 1, 1, C), 0.0)
    feat = jnp.mean(x, axis=(1, 2))
    return feat @ fc_w + fc_b


# ----------------------------------------------------------------------------
# Forward pass
# ----------------------------------------------------------------------------
def densenet_forward(x_nchw, params):
    h = _stem(x_nchw, params["conv0"], *params["norm0"])     # (N, H, W, 128) bf16

    num_features = NUM_INIT_FEATURES
    for bi, layers in enumerate(params["blocks"]):
        n_layers = len(layers)
        c_final = num_features + n_layers * GROWTH           # 256/512/1024/1024
        # persistent per-block feature buffer; channels beyond the input start at 0
        buf = jnp.pad(h, ((0, 0), (0, 0), (0, 0), (0, c_final - h.shape[-1])))
        for li, lp in enumerate(layers):
            offset = jnp.array(num_features + li * GROWTH, dtype=jnp.int32)
            buf = _dense_layer_step(buf, lp["bn1_s"], lp["bn1_b"], lp["conv1"],
                                    lp["bn2_s"], lp["bn2_b"], lp["conv2"], offset)
        num_features = c_final
        if bi < len(params["transitions"]):
            tp = params["transitions"][bi]
            h = _transition_step(buf, tp["bn_s"], tp["bn_b"], tp["conv"])
            num_features //= 2
        else:
            h = buf

    return _tail(h, *params["norm5"], params["fc_w"], params["fc_b"])


# ----------------------------------------------------------------------------
if __name__ == "__main__":
    key = jax.random.PRNGKey(0)
    k_params, k_input = jax.random.split(key)

    params = build_densenet121_params(k_params)

    # Small input consistent with the module's forward (NCHW, 3 channels).
    x = jax.random.normal(k_input, (2, 3, 64, 64), jnp.float32)

    logits = densenet_forward(x, params)
    logits = jax.block_until_ready(logits)

    assert logits.shape == (2, 2), logits.shape
    assert bool(jnp.all(jnp.isfinite(logits)))
    print("KERNEL_OK")
</pallas_src>

<mosaic_0001>
module attributes {stable_mosaic.version = 11 : i64} {
  func.func @_fused_mm_kernel(%arg0: i32, %arg1: i32, %arg2: memref<256x256xbf16, #tpu.memory_space<vmem>>, %arg3: memref<256x128xbf16, #tpu.memory_space<vmem>>, %arg4: memref<1x128xf32, #tpu.memory_space<vmem>>, %arg5: memref<1x128xf32, #tpu.memory_space<vmem>>, %arg6: memref<256x128xbf16, #tpu.memory_space<vmem>>) attributes {dimension_semantics = [#tpu.dimension_semantics<parallel>, #tpu.dimension_semantics<parallel>], iteration_bounds = array<i64: 8, 1>, scalar_prefetch = 0 : i64, scratch_operands = 0 : i64, tpu.core_type = #tpu.core_type<tc>, window_params = [{transform_indices = @transform_0, window_bounds = array<i64: 256, 256>}, {transform_indices = @transform_1, window_bounds = array<i64: 256, 128>}, {transform_indices = @transform_2, window_bounds = array<i64: 1, 128>}, {transform_indices = @transform_3, window_bounds = array<i64: 1, 128>}, {transform_indices = @transform_4, window_bounds = array<i64: 256, 128>}]} {
    %c0 = arith.constant 0 : index
    %c0_0 = arith.constant 0 : index
    %0 = vector.load %arg2[%c0, %c0_0] : memref<256x256xbf16, #tpu.memory_space<vmem>>, vector<256x256xbf16>
    %c0_1 = arith.constant 0 : index
    %c0_2 = arith.constant 0 : index
    %1 = vector.load %arg3[%c0_1, %c0_2] : memref<256x128xbf16, #tpu.memory_space<vmem>>, vector<256x128xbf16>
    %cst = arith.constant dense<0.000000e+00> : vector<256x128xf32>
    %2 = tpu.matmul %0, %1, %cst {dimension_numbers = #tpu.dot_dimension_numbers<[1], [0], [0], [1], [0, 0, 1, 1], [], []>} : vector<256x256xbf16>, vector<256x128xbf16>, vector<256x128xf32> -> vector<256x128xf32>
    %c0_3 = arith.constant 0 : index
    %c0_4 = arith.constant 0 : index
    %3 = vector.load %arg4[%c0_3, %c0_4] : memref<1x128xf32, #tpu.memory_space<vmem>>, vector<1x128xf32>
    %4 = vector.broadcast %3 : vector<1x128xf32> to vector<256x128xf32>
    %5 = arith.mulf %2, %4 : vector<256x128xf32>
    %c0_5 = arith.constant 0 : index
    %c0_6 = arith.constant 0 : index
    %6 = vector.load %arg5[%c0_5, %c0_6] : memref<1x128xf32, #tpu.memory_space<vmem>>, vector<1x128xf32>
    %7 = vector.broadcast %6 : vector<1x128xf32> to vector<256x128xf32>
    %8 = arith.addf %5, %7 : vector<256x128xf32>
    %cst_7 = arith.constant 0.000000e+00 : f32
    %9 = vector.broadcast %cst_7 : f32 to vector<256x128xf32>
    %10 = arith.maximumf %8, %9 : vector<256x128xf32>
    %11 = arith.truncf %10 : vector<256x128xf32> to vector<256x128xbf16>
    %c0_8 = arith.constant 0 : index
    %c0_9 = arith.constant 0 : index
    %12 = vector.load %arg6[%c0_8, %c0_9] : memref<256x128xbf16, #tpu.memory_space<vmem>>, vector<256x128xbf16>
    tpu.vector_store %arg6[%c0_8, %c0_9], %11 {strides = array<i32>} : memref<256x128xbf16, #tpu.memory_space<vmem>>, vector<256x128xbf16>,
    return
  }
  func.func @transform_0(%arg0: i32, %arg1: i32) -> (i32, i32) {
    %c0_i32 = arith.constant 0 : i32
    %c0_i32_0 = arith.constant 0 : i32
    return %arg0, %c0_i32 : i32, i32
  }
  func.func @transform_1(%arg0: i32, %arg1: i32) -> (i32, i32) {
    %c0_i32 = arith.constant 0 : i32
    %c0_i32_0 = arith.constant 0 : i32
    return %c0_i32, %arg1 : i32, i32
  }
  func.func @transform_2(%arg0: i32, %arg1: i32) -> (i32, i32) {
    %c0_i32 = arith.constant 0 : i32
    %c0_i32_0 = arith.constant 0 : i32
    return %c0_i32, %arg1 : i32, i32
  }
  func.func @transform_3(%arg0: i32, %arg1: i32) -> (i32, i32) {
    %c0_i32 = arith.constant 0 : i32
    %c0_i32_0 = arith.constant 0 : i32
    return %c0_i32, %arg1 : i32, i32
  }
  func.func @transform_4(%arg0: i32, %arg1: i32) -> (i32, i32) {
    %c0_i32 = arith.constant 0 : i32
    return %arg0, %arg1 : i32, i32
  }
}

</mosaic_0001>

<llo_original>
// kernel: _stem.1
$region0: #{_stem.1}
  #allocation0 [shape = 'u32[]', space=smem, size = 0x4, offset = 0x4, fixed_abs, tag = 'smem constant byte address 0x4 - core index']
  #allocation1 [shape = 'u32[144,128]{1,0:T(1,128)}', space=vmem, size = 0x12000, scoped, tag = 'internal scratch']
  %s0 = inlined_call_operand.vmem [shape: bf16[2048,256], index: 0, kind: input, shape index: {}]
  %s1 = inlined_call_operand.vmem [shape: bf16[256,128], index: 1, kind: input, shape index: {}]
  %s2 = inlined_call_operand.vmem [shape: f32[1,128], index: 2, kind: input, shape index: {}]
  %s3 = inlined_call_operand.vmem [shape: f32[1,128], index: 3, kind: input, shape index: {}]
  %s4 = inlined_call_operand.vmem [shape: bf16[2048,128], index: 4, kind: output, shape index: {}]
  %s5 = sld [smem:[#allocation0]]
  $region49: #{_stem.1} parent=0
    _
  %s7 = ssub.s32 1, %s5
  %s8 = scalar_select 0, %s7, %s5
  loop: start=0, step=1, limit=10
  $region2: #{_stem.1} parent=0 // loop_pre_header
    _
  $region3: #{_stem.1} parent=0 // loop_header
    %s10 = sphi 0, %s14
    %p11 = scmp.ge.s32.totalorder %s10, 10
    %s17 = sphi 0, %s29
    %s18 = sphi 0, %s25
    %s19 = sphi 0, %s17
    %s20 = sphi 0, %s18
    %s21 = sphi 0, %s19
    %s22 = sphi 0, %s20
    %s32 = sphi 0, %s34
    %s35 = sphi 0, %s32
    %s36 = sphi 0, %s35
    %s52 = sphi 0, %s36
    %s58 = sphi 0, %s60
    %s61 = sphi 0, %s58
    %s62 = sphi 0, %s61
    %s78 = sphi 0, %s62
    %s84 = sphi 0, %s86
    %s87 = sphi 0, %s84
    %s88 = sphi 0, %s87
    %s104 = sphi 0, %s88
    %s110 = sphi 0, %s112
    %s113 = sphi 0, %s110
    %s114 = sphi 0, %s113
    %s130 = sphi 0, %s114
    %s138 = sphi 0, %s140
    %s141 = sphi 0, %s138
    %s142 = sphi 0, %s141
    %s158 = sphi 0, %s142
  $region4: #{_stem.1} parent=0 // loop_header_branch
    %13 = sbr.rel (%p11) target = $region8
  $region5: #{_stem.1} parent=0 // loop_body
    %s15 = ssub.s32 %s10, 1
    %s16 = ssub.s32 %s10, 2
    %s23 = sadd.s32 1, %s18
    %p24 = scmp.ge.s32.totalorder %s23, 1
    %s25 = scalar_select %p24, 0, %s23
    %s26 = sadd.s32 1, %s17
    %s27 = scalar_select %p24, %s26, %s17
    %p28 = scmp.ge.s32.totalorder %s27, 8
    %s29 = scalar_select %p28, 0, %s27
    %s30 = ssub.s32 %s17, %s29
    %p31 = scmp.eq.s32.totalorder %s30, 0
    %s33 = sadd.s32 %s32, 1
    %s34 = scalar_select %p31, %s32, %s33
    %p37 = pneg %p31
    %p38 = scmp.eq.s32.totalorder %s10, 7
    %p39 = por %p37, %p38
    %p40 = scmp.ne.s32.totalorder %s32, %s35
    %p41 = scmp.eq.s32.totalorder %s10, 0
    %p42 = por %p40, %p41
    %p43 = scmp.ne.s32.totalorder %s32, %s35
    %p44 = scmp.eq.s32.totalorder %s15, 7
    %p45 = por %p43, %p44
    %p46 = scmp.ne.s32.totalorder %s35, %s36
    %p47 = scmp.eq.s32.totalorder %s15, 0
    %p48 = por %p46, %p47
    %p49 = scmp.ne.s32.totalorder %s35, %s36
    %p50 = scmp.eq.s32.totalorder %s16, 7
    %p51 = por %p49, %p50
    %p53 = scmp.ne.s32.totalorder %s36, %s52
    %p54 = scmp.eq.s32.totalorder %s16, 0
    %p55 = por %p53, %p54
    %s56 = ssub.s32 %s18, %s25
    %p57 = scmp.eq.s32.totalorder %s56, 0
    %s59 = sadd.s32 %s58, 1
    %s60 = scalar_select %p57, %s58, %s59
    %p63 = pneg %p57
    %p64 = scmp.eq.s32.totalorder %s10, 7
    %p65 = por %p63, %p64
    %p66 = scmp.ne.s32.totalorder %s58, %s61
    %p67 = scmp.eq.s32.totalorder %s10, 0
    %p68 = por %p66, %p67
    %p69 = scmp.ne.s32.totalorder %s58, %s61
    %p70 = scmp.eq.s32.totalorder %s15, 7
    %p71 = por %p69, %p70
    %p72 = scmp.ne.s32.totalorder %s61, %s62
    %p73 = scmp.eq.s32.totalorder %s15, 0
    %p74 = por %p72, %p73
    %p75 = scmp.ne.s32.totalorder %s61, %s62
    %p76 = scmp.eq.s32.totalorder %s16, 7
    %p77 = por %p75, %p76
    %p79 = scmp.ne.s32.totalorder %s62, %s78
    %p80 = scmp.eq.s32.totalorder %s16, 0
    %p81 = por %p79, %p80
    %s82 = ssub.s32 %s18, %s25
    %p83 = scmp.eq.s32.totalorder %s82, 0
    %s85 = sadd.s32 %s84, 1
    %s86 = scalar_select %p83, %s84, %s85
    %p89 = pneg %p83
    %p90 = scmp.eq.s32.totalorder %s10, 7
    %p91 = por %p89, %p90
    %p92 = scmp.ne.s32.totalorder %s84, %s87
    %p93 = scmp.eq.s32.totalorder %s10, 0
    %p94 = por %p92, %p93
    %p95 = scmp.ne.s32.totalorder %s84, %s87
    %p96 = scmp.eq.s32.totalorder %s15, 7
    %p97 = por %p95, %p96
    %p98 = scmp.ne.s32.totalorder %s87, %s88
    %p99 = scmp.eq.s32.totalorder %s15, 0
    %p100 = por %p98, %p99
    %p101 = scmp.ne.s32.totalorder %s87, %s88
    %p102 = scmp.eq.s32.totalorder %s16, 7
    %p103 = por %p101, %p102
    %p105 = scmp.ne.s32.totalorder %s88, %s104
    %p106 = scmp.eq.s32.totalorder %s16, 0
    %p107 = por %p105, %p106
    %s108 = ssub.s32 %s18, %s25
    %p109 = scmp.eq.s32.totalorder %s108, 0
    %s111 = sadd.s32 %s110, 1
    %s112 = scalar_select %p109, %s110, %s111
    %p115 = pneg %p109
    %p116 = scmp.eq.s32.totalorder %s10, 7
    %p117 = por %p115, %p116
    %p118 = scmp.ne.s32.totalorder %s110, %s113
    %p119 = scmp.eq.s32.totalorder %s10, 0
    %p120 = por %p118, %p119
    %p121 = scmp.ne.s32.totalorder %s110, %s113
    %p122 = scmp.eq.s32.totalorder %s15, 7
    %p123 = por %p121, %p122
    %p124 = scmp.ne.s32.totalorder %s113, %s114
    %p125 = scmp.eq.s32.totalorder %s15, 0
    %p126 = por %p124, %p125
    %p127 = scmp.ne.s32.totalorder %s113, %s114
    %p128 = scmp.eq.s32.totalorder %s16, 7
    %p129 = por %p127, %p128
    %p131 = scmp.ne.s32.totalorder %s114, %s130
    %p132 = scmp.eq.s32.totalorder %s16, 0
    %p133 = por %p131, %p132
    %s134 = ssub.s32 %s17, %s29
    %s135 = ssub.s32 %s18, %s25
    %s136 = sor.u32 %s134, %s135
    %p137 = scmp.eq.s32.totalorder %s136, 0
    %s139 = sadd.s32 %s138, 1
    %s140 = scalar_select %p137, %s138, %s139
    %p143 = pneg %p137
    %p144 = scmp.eq.s32.totalorder %s10, 7
    %p145 = por %p143, %p144
    %p146 = scmp.ne.s32.totalorder %s138, %s141
    %p147 = scmp.eq.s32.totalorder %s10, 0
    %p148 = por %p146, %p147
    %p149 = scmp.ne.s32.totalorder %s138, %s141
    %p150 = scmp.eq.s32.totalorder %s15, 7
    %p151 = por %p149, %p150
    %p152 = scmp.ne.s32.totalorder %s141, %s142
    %p153 = scmp.eq.s32.totalorder %s15, 0
    %p154 = por %p152, %p153
    %p155 = scmp.ne.s32.totalorder %s141, %s142
    %p156 = scmp.eq.s32.totalorder %s16, 7
    %p157 = por %p155, %p156
    %p159 = scmp.ne.s32.totalorder %s142, %s158
    %p160 = scmp.eq.s32.totalorder %s16, 0
    %p161 = por %p159, %p160
    %p162 = scmp.le.s32.totalorder 1, %s10
    %p163 = scmp.lt.s32.totalorder %s10, 9
    %p164 = pnand %p162, %p163
    %p165 = pneg %p164
    // Predicated region
    $region9: #{_stem.1} parent=5 // pred_check
      _
    $region10: #{_stem.1} parent=5 // pred_check_branch
      %167 = sbr.rel (%p164) target = $region12
    $region11: #{_stem.1} parent=5 // pred_region
      %s168 = ssub.s32 %s10, 1
      // Predicated region
      $region13: #{_stem.1} parent=11 // pred_check
        %p169 = pneg %p74
      $region14: #{_stem.1} parent=11 // pred_check_branch
        %171 = sbr.rel (%p169) target = $region16
      $region15: #{_stem.1} parent=11 // pred_region
        %p172 = scmp.lt.s32.totalorder %s20, 0
        %s173 = scalar_select %p172, %s20, 0
        %s174 = smul.addr %s173, 4
        %s175 = scalar_lea.vmem %s1, %s174
      $region16: #{_stem.1} parent=11 // pred_fallthru
        _
      // Predicated region
      $region17: #{_stem.1} parent=11 // pred_check
        %p176 = pneg %p100
      $region18: #{_stem.1} parent=11 // pred_check_branch
        %178 = sbr.rel (%p176) target = $region20
      $region19: #{_stem.1} parent=11 // pred_region
        %p179 = scmp.lt.s32.totalorder %s20, 0
        %s180 = scalar_select %p179, %s20, 0
        %s181 = scalar_lea.vmem %s2, %s180
      $region20: #{_stem.1} parent=11 // pred_fallthru
        _
      // Predicated region
      $region21: #{_stem.1} parent=11 // pred_check
        %p182 = pneg %p126
      $region22: #{_stem.1} parent=11 // pred_check_branch
        %184 = sbr.rel (%p182) target = $region24
      $region23: #{_stem.1} parent=11 // pred_region
        %p185 = scmp.lt.s32.totalorder %s20, 0
        %s186 = scalar_select %p185, %s20, 0
        %s187 = scalar_lea.vmem %s3, %s186
      $region24: #{_stem.1} parent=11 // pred_fallthru
        _
    $region12: #{_stem.1} parent=5 // pred_fallthru
      _
    %p188 = scmp.lt.s32.totalorder %s10, 8
    // Predicated region
    $region25: #{_stem.1} parent=5 // pred_check
      %p189 = pneg %p188
    $region26: #{_stem.1} parent=5 // pred_check_branch
      %191 = sbr.rel (%p189) target = $region28
    $region27: #{_stem.1} parent=5 // pred_region
      // Predicated region
      $region29: #{_stem.1} parent=27 // pred_check
        %p192 = pneg %p42
      $region30: #{_stem.1} parent=27 // pred_check_branch
        %194 = sbr.rel (%p192) target = $region32
      $region31: #{_stem.1} parent=27 // pred_region
        %s195 = smul.u32 32, %s17
        %p196 = scmp.lt.s32.totalorder %s195, 255
        %s197 = scalar_select %p196, %s195, 255
        %s198 = smul.addr %s197, 2
        %s199 = smul.addr %s198, 4
        %s200 = scalar_lea.vmem %s0, %s199
        %s201 = smul.u32 32, %s17
      $region32: #{_stem.1} parent=27 // pred_fallthru
        _
    $region28: #{_stem.1} parent=5 // pred_fallthru
      _
    %p202 = scmp.le.s32.totalorder 1, %s10
    %p203 = scmp.lt.s32.totalorder %s10, 9
    %p204 = pnand %p202, %p203
    %p205 = pneg %p204
    // Predicated region
    $region33: #{_stem.1} parent=5 // pred_check
      _
    $region34: #{_stem.1} parent=5 // pred_check_branch
      %207 = sbr.rel (%p204) target = $region36
    $region35: #{_stem.1} parent=5 // pred_region
      %s208 = ssub.s32 %s10, 1
      %s209 = smul.u32 32, %s19
      %p210 = scmp.lt.s32.totalorder %s209, 255
      %s211 = scalar_select %p210, %s209, 255
      %s212 = smul.addr %s211, 2
      %s213 = smul.addr %s212, 4
      %s214 = scalar_lea.vmem %s0, %s213
      %p215 = pneg %p48
      %p216 = pneg %p45
      %p217 = scmp.lt.s32.totalorder %s20, 0
      %s218 = scalar_select %p217, %s20, 0
      %s219 = smul.addr %s218, 4
      %s220 = scalar_lea.vmem %s1, %s219
      %p221 = pneg %p74
      %p222 = pneg %p71
      %p223 = scmp.lt.s32.totalorder %s20, 0
      %s224 = scalar_select %p223, %s20, 0
      %s225 = scalar_lea.vmem %s2, %s224
      %p226 = pneg %p100
      %p227 = pneg %p97
      %p228 = scmp.lt.s32.totalorder %s20, 0
      %s229 = scalar_select %p228, %s20, 0
      %s230 = scalar_lea.vmem %s3, %s229
      %p231 = pneg %p126
      %p232 = pneg %p123
      %p233 = pneg %p154
      %p234 = pneg %p151
      %s235 = smul.u32 32, %s19
      %p236 = scmp.lt.s32.totalorder %s235, 255
      %s237 = scalar_select %p236, %s235, 255
      %p238 = scmp.lt.s32.totalorder %s20, 0
      %s239 = scalar_select %p238, %s20, 0
      %s240 = sadd.s32 %s239, %s237
      %s241 = smul.addr %s240, 4
      %s242 = scalar_lea.vmem %s4, %s241
      %s243 = smul.u32 32, %s19
      %p244 = scmp.lt.s32.totalorder %s243, 255
      %s245 = scalar_select %p244, %s243, 255
      %s246 = smul.addr %s245, 2
      %s247 = smul.addr %s246, 4
      %s248 = scalar_lea.vmem %s0, %s247
      %s249 = smul.u32 32, %s19
      %p250 = scmp.lt.s32.totalorder %s20, 0
      %s251 = scalar_select %p250, %s20, 0
      %s252 = smul.addr %s251, 4
      %s253 = scalar_lea.vmem %s1, %s252
      %p254 = scmp.lt.s32.totalorder %s20, 0
      %s255 = scalar_select %p254, %s20, 0
      %s256 = scalar_lea.vmem %s2, %s255
      %p257 = scmp.lt.s32.totalorder %s20, 0
      %s258 = scalar_select %p257, %s20, 0
      %s259 = scalar_lea.vmem %s3, %s258
      %s260 = smul.u32 32, %s19
      %p261 = scmp.lt.s32.totalorder %s260, 255
      %s262 = scalar_select %p261, %s260, 255
      %p263 = scmp.lt.s32.totalorder %s20, 0
      %s264 = scalar_select %p263, %s20, 0
      %s265 = sadd.s32 %s264, %s262
      %s266 = smul.addr %s265, 4
      %s267 = scalar_lea.vmem %s4, %s266
      %s268 = smul.u32 32, %s19
      %v270 = vld [vmem:[%s248] sm:$0xff]
      %v271 = vld [vmem:[%s248 + $0x8] sm:$0xff]
      %v272 = vld [vmem:[%s248 + $0x10] sm:$0xff]
      %v273 = vld [vmem:[%s248 + $0x18] sm:$0xff]
      %v274 = vld [vmem:[%s248 + $0x20] sm:$0xff]
      %v275 = vld [vmem:[%s248 + $0x28] sm:$0xff]
      %v276 = vld [vmem:[%s248 + $0x30] sm:$0xff]
      %v277 = vld [vmem:[%s248 + $0x38] sm:$0xff]
      %v278 = vld [vmem:[%s248 + $0x40] sm:$0xff]
      %v279 = vld [vmem:[%s248 + $0x48] sm:$0xff]
      %v280 = vld [vmem:[%s248 + $0x50] sm:$0xff]
      %v281 = vld [vmem:[%s248 + $0x58] sm:$0xff]
      %v282 = vld [vmem:[%s248 + $0x60] sm:$0xff]
      %v283 = vld [vmem:[%s248 + $0x68] sm:$0xff]
      %v284 = vld [vmem:[%s248 + $0x70] sm:$0xff]
      %v285 = vld [vmem:[%s248 + $0x78] sm:$0xff]
      %v286 = vld [vmem:[%s248 + $0x80] sm:$0xff]
      %v287 = vld [vmem:[%s248 + $0x88] sm:$0xff]
      %v288 = vld [vmem:[%s248 + $0x90] sm:$0xff]
      %v289 = vld [vmem:[%s248 + $0x98] sm:$0xff]
      %v290 = vld [vmem:[%s248 + $0xa0] sm:$0xff]
      %v291 = vld [vmem:[%s248 + $0xa8] sm:$0xff]
      %v292 = vld [vmem:[%s248 + $0xb0] sm:$0xff]
      %v293 = vld [vmem:[%s248 + $0xb8] sm:$0xff]
      %v294 = vld [vmem:[%s248 + $0xc0] sm:$0xff]
      %v295 = vld [vmem:[%s248 + $0xc8] sm:$0xff]
      %v296 = vld [vmem:[%s248 + $0xd0] sm:$0xff]
      %v297 = vld [vmem:[%s248 + $0xd8] sm:$0xff]
      %v298 = vld [vmem:[%s248 + $0xe0] sm:$0xff]
      %v299 = vld [vmem:[%s248 + $0xe8] sm:$0xff]
      %v300 = vld [vmem:[%s248 + $0xf0] sm:$0xff]
      %v301 = vld [vmem:[%s248 + $0xf8] sm:$0xff]
      %v302 = vld [vmem:[%s253] sm:$0xf]
      %v303 = vld [vmem:[%s253 + $0x4] sm:$0xf]
      %v304 = vld [vmem:[%s253 + $0x8] sm:$0xf]
      %v305 = vld [vmem:[%s253 + $0xc] sm:$0xf]
      %v306 = vld [vmem:[%s253 + $0x10] sm:$0xf]
      %v307 = vld [vmem:[%s253 + $0x14] sm:$0xf]
      %v308 = vld [vmem:[%s253 + $0x18] sm:$0xf]
      %v309 = vld [vmem:[%s253 + $0x1c] sm:$0xf]
      %v310 = vld [vmem:[%s253 + $0x20] sm:$0xf]
      %v311 = vld [vmem:[%s253 + $0x24] sm:$0xf]
      %v312 = vld [vmem:[%s253 + $0x28] sm:$0xf]
      %v313 = vld [vmem:[%s253 + $0x2c] sm:$0xf]
      %v314 = vld [vmem:[%s253 + $0x30] sm:$0xf]
      %v315 = vld [vmem:[%s253 + $0x34] sm:$0xf]
      %v316 = vld [vmem:[%s253 + $0x38] sm:$0xf]
      %v317 = vld [vmem:[%s253 + $0x3c] sm:$0xf]
      %v318 = vld [vmem:[%s253 + $0x40] sm:$0xf]
      %v319 = vld [vmem:[%s253 + $0x44] sm:$0xf]
      %v320 = vld [vmem:[%s253 + $0x48] sm:$0xf]
      %v321 = vld [vmem:[%s253 + $0x4c] sm:$0xf]
      %v322 = vld [vmem:[%s253 + $0x50] sm:$0xf]
      %v323 = vld [vmem:[%s253 + $0x54] sm:$0xf]
      %v324 = vld [vmem:[%s253 + $0x58] sm:$0xf]
      %v325 = vld [vmem:[%s253 + $0x5c] sm:$0xf]
      %v326 = vld [vmem:[%s253 + $0x60] sm:$0xf]
      %v327 = vld [vmem:[%s253 + $0x64] sm:$0xf]
      %v328 = vld [vmem:[%s253 + $0x68] sm:$0xf]
      %v329 = vld [vmem:[%s253 + $0x6c] sm:$0xf]
      %v330 = vld [vmem:[%s253 + $0x70] sm:$0xf]
      %v331 = vld [vmem:[%s253 + $0x74] sm:$0xf]
      %v332 = vld [vmem:[%s253 + $0x78] sm:$0xf]
      %v333 = vld [vmem:[%s253 + $0x7c] sm:$0xf]
      %v366 = vunpack.c.l.b16 %v270
      %v367 = vunpack.c.h.b16 %v270
      %v368 = vunpack.c.l.b16 %v271
      %v369 = vunpack.c.h.b16 %v271
      %v370 = vunpack.c.l.b16 %v272
      %v371 = vunpack.c.h.b16 %v272
      %v372 = vunpack.c.l.b16 %v273
      %v373 = vunpack.c.h.b16 %v273
      %v374 = vunpack.c.l.b16 %v274
      %v375 = vunpack.c.h.b16 %v274
      %v376 = vunpack.c.l.b16 %v275
      %v377 = vunpack.c.h.b16 %v275
      %v378 = vunpack.c.l.b16 %v276
      %v379 = vunpack.c.h.b16 %v276
      %v380 = vunpack.c.l.b16 %v277
      %v381 = vunpack.c.h.b16 %v277
      %v382 = vunpack.c.l.b16 %v278
      %v383 = vunpack.c.h.b16 %v278
      %v384 = vunpack.c.l.b16 %v279
      %v385 = vunpack.c.h.b16 %v279
      %v386 = vunpack.c.l.b16 %v280
      %v387 = vunpack.c.h.b16 %v280
      %v388 = vunpack.c.l.b16 %v281
      %v389 = vunpack.c.h.b16 %v281
      %v390 = vunpack.c.l.b16 %v282
      %v391 = vunpack.c.h.b16 %v282
      %v392 = vunpack.c.l.b16 %v283
      %v393 = vunpack.c.h.b16 %v283
      %v394 = vunpack.c.l.b16 %v284
      %v395 = vunpack.c.h.b16 %v284
      %v396 = vunpack.c.l.b16 %v285
      %v397 = vunpack.c.h.b16 %v285
      %v398 = vunpack.c.l.b16 %v286
      %v399 = vunpack.c.h.b16 %v286
      %v400 = vunpack.c.l.b16 %v287
      %v401 = vunpack.c.h.b16 %v287
      %v402 = vunpack.c.l.b16 %v288
      %v403 = vunpack.c.h.b16 %v288
      %v404 = vunpack.c.l.b16 %v289
      %v405 = vunpack.c.h.b16 %v289
      %v406 = vunpack.c.l.b16 %v290
      %v407 = vunpack.c.h.b16 %v290
      %v408 = vunpack.c.l.b16 %v291
      %v409 = vunpack.c.h.b16 %v291
      %v410 = vunpack.c.l.b16 %v292
      %v411 = vunpack.c.h.b16 %v292
      %v412 = vunpack.c.l.b16 %v293
      %v413 = vunpack.c.h.b16 %v293
      %v414 = vunpack.c.l.b16 %v294
      %v415 = vunpack.c.h.b16 %v294
      %v416 = vunpack.c.l.b16 %v295
      %v417 = vunpack.c.h.b16 %v295
      %v418 = vunpack.c.l.b16 %v296
      %v419 = vunpack.c.h.b16 %v296
      %v420 = vunpack.c.l.b16 %v297
      %v421 = vunpack.c.h.b16 %v297
      %v422 = vunpack.c.l.b16 %v298
      %v423 = vunpack.c.h.b16 %v298
      %v424 = vunpack.c.l.b16 %v299
      %v425 = vunpack.c.h.b16 %v299
      %v426 = vunpack.c.l.b16 %v300
      %v427 = vunpack.c.h.b16 %v300
      %v428 = vunpack.c.l.b16 %v301
      %v429 = vunpack.c.h.b16 %v301
      %v430 = vpack.c.b16 %v368, %v366
      %v431 = vpack.c.b16 %v369, %v367
      %v432 = vpack.c.b16 %v372, %v370
      %v433 = vpack.c.b16 %v373, %v371
      %v434 = vpack.c.b16 %v376, %v374
      %v435 = vpack.c.b16 %v377, %v375
      %v436 = vpack.c.b16 %v380, %v378
      %v437 = vpack.c.b16 %v381, %v379
      %v438 = vpack.c.b16 %v384, %v382
      %v439 = vpack.c.b16 %v385, %v383
      %v440 = vpack.c.b16 %v388, %v386
      %v441 = vpack.c.b16 %v389, %v387
      %v442 = vpack.c.b16 %v392, %v390
      %v443 = vpack.c.b16 %v393, %v391
      %v444 = vpack.c.b16 %v396, %v394
      %v445 = vpack.c.b16 %v397, %v395
      %v446 = vpack.c.b16 %v400, %v398
      %v447 = vpack.c.b16 %v401, %v399
      %v448 = vpack.c.b16 %v404, %v402
      %v449 = vpack.c.b16 %v405, %v403
      %v450 = vpack.c.b16 %v408, %v406
      %v451 = vpack.c.b16 %v409, %v407
      %v452 = vpack.c.b16 %v412, %v410
      %v453 = vpack.c.b16 %v413, %v411
      %v454 = vpack.c.b16 %v416, %v414
      %v455 = vpack.c.b16 %v417, %v415
      %v456 = vpack.c.b16 %v420, %v418
      %v457 = vpack.c.b16 %v421, %v419
      %v458 = vpack.c.b16 %v424, %v422
      %v459 = vpack.c.b16 %v425, %v423
      %v460 = vpack.c.b16 %v428, %v426
      %v461 = vpack.c.b16 %v429, %v427
      %v526 = vunpack.c.l.b16 %v302
      %v527 = vunpack.c.l.b16 %v303
      %v528 = vunpack.c.l.b16 %v304
      %v529 = vunpack.c.l.b16 %v305
      %v530 = vunpack.c.l.b16 %v306
      %v531 = vunpack.c.l.b16 %v307
      %v532 = vunpack.c.l.b16 %v308
      %v533 = vunpack.c.l.b16 %v309
      %v534 = vunpack.c.l.b16 %v310
      %v535 = vunpack.c.l.b16 %v311
      %v536 = vunpack.c.l.b16 %v312
      %v537 = vunpack.c.l.b16 %v313
      %v538 = vunpack.c.l.b16 %v314
      %v539 = vunpack.c.l.b16 %v315
      %v540 = vunpack.c.l.b16 %v316
      %v541 = vunpack.c.l.b16 %v317
      %v542 = vunpack.c.l.b16 %v318
      %v543 = vunpack.c.l.b16 %v319
      %v544 = vunpack.c.l.b16 %v320
      %v545 = vunpack.c.l.b16 %v321
      %v546 = vunpack.c.l.b16 %v322
      %v547 = vunpack.c.l.b16 %v323
      %v548 = vunpack.c.l.b16 %v324
      %v549 = vunpack.c.l.b16 %v325
      %v550 = vunpack.c.l.b16 %v326
      %v551 = vunpack.c.l.b16 %v327
      %v552 = vunpack.c.l.b16 %v328
      %v553 = vunpack.c.l.b16 %v329
      %v554 = vunpack.c.l.b16 %v330
      %v555 = vunpack.c.l.b16 %v331
      %v556 = vunpack.c.l.b16 %v332
      %v557 = vunpack.c.l.b16 %v333
      %v558 = vpack.c.b16 %v527, %v526
      %v559 = vpack.c.b16 %v529, %v528
      %v560 = vpack.c.b16 %v531, %v530
      %v561 = vpack.c.b16 %v533, %v532
      %v562 = vpack.c.b16 %v535, %v534
      %v563 = vpack.c.b16 %v537, %v536
      %v564 = vpack.c.b16 %v539, %v538
      %v565 = vpack.c.b16 %v541, %v540
      %v566 = vpack.c.b16 %v543, %v542
      %v567 = vpack.c.b16 %v545, %v544
      %v568 = vpack.c.b16 %v547, %v546
      %v569 = vpack.c.b16 %v549, %v548
      %v570 = vpack.c.b16 %v551, %v550
      %v571 = vpack.c.b16 %v553, %v552
      %v572 = vpack.c.b16 %v555, %v554
      %v573 = vpack.c.b16 %v557, %v556
      %590 = vmatprep.subr.bf16.mxu0 0
      %591 = vmatpush1.bf16.msra.mxu0 %v565
      %592 = vmatprep.subr.bf16.mxu0 0
      %593 = vmatpush1.bf16.msra.mxu0 %v564
      %594 = vmatprep.subr.bf16.mxu0 0
      %595 = vmatpush1.bf16.msra.mxu0 %v563
      %596 = vmatprep.subr.bf16.mxu0 0
      %597 = vmatpush1.bf16.msra.mxu0 %v562
      %598 = vmatprep.subr.bf16.mxu0 0
      %599 = vmatpush1.bf16.msra.mxu0 %v561
      %600 = vmatprep.subr.bf16.mxu0 0
      %601 = vmatpush1.bf16.msra.mxu0 %v560
      %602 = vmatprep.subr.bf16.mxu0 0
      %603 = vmatpush1.bf16.msra.mxu0 %v559
      %604 = vmatprep.subr.bf16.mxu0 0
      %605 = vmatpush1.bf16.msra.mxu0 %v558
      %606 = vmatprep.subr.bf16.mxu0 0
      %607 = vmatpush2.bf16.msra.mxu0 %v573
      %608 = vmatprep.subr.bf16.mxu0 0
      %609 = vmatpush2.bf16.msra.mxu0 %v572
      %610 = vmatprep.subr.bf16.mxu0 0
      %611 = vmatpush2.bf16.msra.mxu0 %v571
      %612 = vmatprep.subr.bf16.mxu0 0
      %613 = vmatpush2.bf16.msra.mxu0 %v570
      %614 = vmatprep.subr.bf16.mxu0 0
      %615 = vmatpush2.bf16.msra.mxu0 %v569
      %616 = vmatprep.subr.bf16.mxu0 0
      %617 = vmatpush2.bf16.msra.mxu0 %v568
      %618 = vmatprep.subr.bf16.mxu0 0
      %619 = vmatpush2.bf16.msra.mxu0 %v567
      %620 = vmatprep.subr.bf16.mxu0 0
      %621 = vmatpush2.bf16.msra.mxu0 %v566
      %622 = vmatprep.mubr.bf16.mxu0 %v431
      %623 = vmatmul.mubr.bf16.gmra.mxu0 %v430
      %v624 = vpop.f32.mrf.mxu0
      %v625 = vadd.f32 0.0, %v624
      %v626 = vpop.f32.mrf.mxu0
      %v627 = vpop.f32.mrf.mxu0
      %v628 = vadd.f32 0.0, %v627
      %v629 = vpop.f32.mrf.mxu0
      %630 = vmatprep.mubr.bf16.mxu0 %v433
      %631 = vmatmul.mubr.bf16.gmra.mxu0 %v432
      %v632 = vpop.f32.mrf.mxu0
      %v633 = vadd.f32 0.0, %v632
      %v634 = vpop.f32.mrf.mxu0
      %v635 = vpop.f32.mrf.mxu0
      %v636 = vadd.f32 0.0, %v635
      %v637 = vpop.f32.mrf.mxu0
      %638 = vmatprep.mubr.bf16.mxu0 %v435
      %639 = vmatmul.mubr.bf16.gmra.mxu0 %v434
      %v640 = vpop.f32.mrf.mxu0
      %v641 = vadd.f32 0.0, %v640
      %v642 = vpop.f32.mrf.mxu0
      %v643 = vpop.f32.mrf.mxu0
      %v644 = vadd.f32 0.0, %v643
      %v645 = vpop.f32.mrf.mxu0
      %646 = vmatprep.mubr.bf16.mxu0 %v437
      %647 = vmatmul.mubr.bf16.gmra.mxu0 %v436
      %v648 = vpop.f32.mrf.mxu0
      %v649 = vadd.f32 0.0, %v648
      %v650 = vpop.f32.mrf.mxu0
      %v651 = vpop.f32.mrf.mxu0
      %v652 = vadd.f32 0.0, %v651
      %v653 = vpop.f32.mrf.mxu0
      %654 = vmatprep.mubr.bf16.mxu0 %v439
      %655 = vmatmul.mubr.bf16.gmra.mxu0 %v438
      %v656 = vpop.f32.mrf.mxu0
      %v657 = vadd.f32 0.0, %v656
      %v658 = vpop.f32.mrf.mxu0
      %v659 = vpop.f32.mrf.mxu0
      %v660 = vadd.f32 0.0, %v659
      %v661 = vpop.f32.mrf.mxu0
      %662 = vmatprep.mubr.bf16.mxu0 %v441
      %663 = vmatmul.mubr.bf16.gmra.mxu0 %v440
      %v664 = vpop.f32.mrf.mxu0
      %v665 = vadd.f32 0.0, %v664
      %v666 = vpop.f32.mrf.mxu0
      %v667 = vpop.f32.mrf.mxu0
      %v668 = vadd.f32 0.0, %v667
      %v669 = vpop.f32.mrf.mxu0
      %670 = vmatprep.mubr.bf16.mxu0 %v443
      %671 = vmatmul.mubr.bf16.gmra.mxu0 %v442
      %v672 = vpop.f32.mrf.mxu0
      %v673 = vadd.f32 0.0, %v672
      %v674 = vpop.f32.mrf.mxu0
      %v675 = vpop.f32.mrf.mxu0
      %v676 = vadd.f32 0.0, %v675
      %v677 = vpop.f32.mrf.mxu0
      %678 = vmatprep.mubr.bf16.mxu0 %v445
      %679 = vmatmul.mubr.bf16.gmra.mxu0 %v444
      %v680 = vpop.f32.mrf.mxu0
      %v681 = vadd.f32 0.0, %v680
      %v682 = vpop.f32.mrf.mxu0
      %v683 = vpop.f32.mrf.mxu0
      %v684 = vadd.f32 0.0, %v683
      %v685 = vpop.f32.mrf.mxu0
      %686 = vmatprep.mubr.bf16.mxu0 %v447
      %687 = vmatmul.mubr.bf16.gmra.mxu0 %v446
      %v688 = vpop.f32.mrf.mxu0
      %v689 = vadd.f32 0.0, %v688
      %v690 = vpop.f32.mrf.mxu0
      %v691 = vpop.f32.mrf.mxu0
      %v692 = vadd.f32 0.0, %v691
      %v693 = vpop.f32.mrf.mxu0
      %694 = vmatprep.mubr.bf16.mxu0 %v449
      %695 = vmatmul.mubr.bf16.gmra.mxu0 %v448
      %v696 = vpop.f32.mrf.mxu0
      %v697 = vadd.f32 0.0, %v696
      %v698 = vpop.f32.mrf.mxu0
      %v699 = vpop.f32.mrf.mxu0
      %v700 = vadd.f32 0.0, %v699
      %v701 = vpop.f32.mrf.mxu0
      %702 = vmatprep.mubr.bf16.mxu0 %v451
      %703 = vmatmul.mubr.bf16.gmra.mxu0 %v450
      %v704 = vpop.f32.mrf.mxu0
      %v705 = vadd.f32 0.0, %v704
      %v706 = vpop.f32.mrf.mxu0
      %v707 = vpop.f32.mrf.mxu0
      %v708 = vadd.f32 0.0, %v707
      %v709 = vpop.f32.mrf.mxu0
      %710 = vmatprep.mubr.bf16.mxu0 %v453
      %711 = vmatmul.mubr.bf16.gmra.mxu0 %v452
      %v712 = vpop.f32.mrf.mxu0
      %v713 = vadd.f32 0.0, %v712
      %v714 = vpop.f32.mrf.mxu0
      %v715 = vpop.f32.mrf.mxu0
      %v716 = vadd.f32 0.0, %v715
      %v717 = vpop.f32.mrf.mxu0
      %718 = vmatprep.mubr.bf16.mxu0 %v455
      %719 = vmatmul.mubr.bf16.gmra.mxu0 %v454
      %v720 = vpop.f32.mrf.mxu0
      %v721 = vadd.f32 0.0, %v720
      %v722 = vpop.f32.mrf.mxu0
      %v723 = vpop.f32.mrf.mxu0
      %v724 = vadd.f32 0.0, %v723
      %v725 = vpop.f32.mrf.mxu0
      %726 = vmatprep.mubr.bf16.mxu0 %v457
      %727 = vmatmul.mubr.bf16.gmra.mxu0 %v456
      %v728 = vpop.f32.mrf.mxu0
      %v729 = vadd.f32 0.0, %v728
      %v730 = vpop.f32.mrf.mxu0
      %v731 = vpop.f32.mrf.mxu0
      %v732 = vadd.f32 0.0, %v731
      %v733 = vpop.f32.mrf.mxu0
      %734 = vmatprep.mubr.bf16.mxu0 %v459
      %735 = vmatmul.mubr.bf16.gmra.mxu0 %v458
      %v736 = vpop.f32.mrf.mxu0
      %v737 = vadd.f32 0.0, %v736
      %v738 = vpop.f32.mrf.mxu0
      %v739 = vpop.f32.mrf.mxu0
      %v740 = vadd.f32 0.0, %v739
      %v741 = vpop.f32.mrf.mxu0
      %742 = vmatprep.mubr.bf16.mxu0 %v461
      %743 = vmatmul.mubr.bf16.gmra.mxu0 %v460
      %v744 = vpop.f32.mrf.mxu0
      %v745 = vadd.f32 0.0, %v744
      %v746 = vpop.f32.mrf.mxu0
      %v747 = vpop.f32.mrf.mxu0
      %v748 = vadd.f32 0.0, %v747
      %v749 = vpop.f32.mrf.mxu0
      %750 = vdwg.mxu0
      %v751 = vld [vmem:[%s256] sm:$0x1]
      %v753 = vlaneseq
      %v754 = vshrl.u32 %v753, 7
      %v755 = vsub.s32 0, %v754
      %v756 = vrot.slane %v751, %v755
      %v758 = vmul.f32 %v625, %v756
      %v759 = vmul.f32 %v628, %v756
      %v760 = vmul.f32 %v633, %v756
      %v761 = vmul.f32 %v636, %v756
      %v762 = vmul.f32 %v641, %v756
      %v763 = vmul.f32 %v644, %v756
      %v764 = vmul.f32 %v649, %v756
      %v765 = vmul.f32 %v652, %v756
      %v766 = vmul.f32 %v657, %v756
      %v767 = vmul.f32 %v660, %v756
      %v768 = vmul.f32 %v665, %v756
      %v769 = vmul.f32 %v668, %v756
      %v770 = vmul.f32 %v673, %v756
      %v771 = vmul.f32 %v676, %v756
      %v772 = vmul.f32 %v681, %v756
      %v773 = vmul.f32 %v684, %v756
      %v774 = vmul.f32 %v689, %v756
      %v775 = vmul.f32 %v692, %v756
      %v776 = vmul.f32 %v697, %v756
      %v777 = vmul.f32 %v700, %v756
      %v778 = vmul.f32 %v705, %v756
      %v779 = vmul.f32 %v708, %v756
      %v780 = vmul.f32 %v713, %v756
      %v781 = vmul.f32 %v716, %v756
      %v782 = vmul.f32 %v721, %v756
      %v783 = vmul.f32 %v724, %v756
      %v784 = vmul.f32 %v729, %v756
      %v785 = vmul.f32 %v732, %v756
      %v786 = vmul.f32 %v737, %v756
      %v787 = vmul.f32 %v740, %v756
      %v788 = vmul.f32 %v745, %v756
      %v789 = vmul.f32 %v748, %v756
      %v790 = vld [vmem:[%s259] sm:$0x1]
      %v792 = vlaneseq
      %v793 = vshrl.u32 %v792, 7
      %v794 = vsub.s32 0, %v793
      %v795 = vrot.slane %v790, %v794
      %v797 = vadd.f32 %v758, %v795
      %v798 = vadd.f32 %v759, %v795
      %v799 = vadd.f32 %v760, %v795
      %v800 = vadd.f32 %v761, %v795
      %v801 = vadd.f32 %v762, %v795
      %v802 = vadd.f32 %v763, %v795
      %v803 = vadd.f32 %v764, %v795
      %v804 = vadd.f32 %v765, %v795
      %v805 = vadd.f32 %v766, %v795
      %v806 = vadd.f32 %v767, %v795
      %v807 = vadd.f32 %v768, %v795
      %v808 = vadd.f32 %v769, %v795
      %v809 = vadd.f32 %v770, %v795
      %v810 = vadd.f32 %v771, %v795
      %v811 = vadd.f32 %v772, %v795
      %v812 = vadd.f32 %v773, %v795
      %v813 = vadd.f32 %v774, %v795
      %v814 = vadd.f32 %v775, %v795
      %v815 = vadd.f32 %v776, %v795
      %v816 = vadd.f32 %v777, %v795
      %v817 = vadd.f32 %v778, %v795
      %v818 = vadd.f32 %v779, %v795
      %v819 = vadd.f32 %v780, %v795
      %v820 = vadd.f32 %v781, %v795
      %v821 = vadd.f32 %v782, %v795
      %v822 = vadd.f32 %v783, %v795
      %v823 = vadd.f32 %v784, %v795
      %v824 = vadd.f32 %v785, %v795
      %v825 = vadd.f32 %v786, %v795
      %v826 = vadd.f32 %v787, %v795
      %v827 = vadd.f32 %v788, %v795
      %v828 = vadd.f32 %v789, %v795
      %v829 = vmax.f32 %v797, 0.0
      %v830 = vmax.f32 %v798, 0.0
      %v831 = vmax.f32 %v799, 0.0
      %v832 = vmax.f32 %v800, 0.0
      %v833 = vmax.f32 %v801, 0.0
      %v834 = vmax.f32 %v802, 0.0
      %v835 = vmax.f32 %v803, 0.0
      %v836 = vmax.f32 %v804, 0.0
      %v837 = vmax.f32 %v805, 0.0
      %v838 = vmax.f32 %v806, 0.0
      %v839 = vmax.f32 %v807, 0.0
      %v840 = vmax.f32 %v808, 0.0
      %v841 = vmax.f32 %v809, 0.0
      %v842 = vmax.f32 %v810, 0.0
      %v843 = vmax.f32 %v811, 0.0
      %v844 = vmax.f32 %v812, 0.0
      %v845 = vmax.f32 %v813, 0.0
      %v846 = vmax.f32 %v814, 0.0
      %v847 = vmax.f32 %v815, 0.0
      %v848 = vmax.f32 %v816, 0.0
      %v849 = vmax.f32 %v817, 0.0
      %v850 = vmax.f32 %v818, 0.0
      %v851 = vmax.f32 %v819, 0.0
      %v852 = vmax.f32 %v820, 0.0
      %v853 = vmax.f32 %v821, 0.0
      %v854 = vmax.f32 %v822, 0.0
      %v855 = vmax.f32 %v823, 0.0
      %v856 = vmax.f32 %v824, 0.0
      %v857 = vmax.f32 %v825, 0.0
      %v858 = vmax.f32 %v826, 0.0
      %v859 = vmax.f32 %v827, 0.0
      %v860 = vmax.f32 %v828, 0.0
      %v861 = vpack.c.bf16 %v830, %v829
      %v862 = vpack.c.bf16 %v832, %v831
      %v863 = vpack.c.bf16 %v834, %v833
      %v864 = vpack.c.bf16 %v836, %v835
      %v865 = vpack.c.bf16 %v838, %v837
      %v866 = vpack.c.bf16 %v840, %v839
      %v867 = vpack.c.bf16 %v842, %v841
      %v868 = vpack.c.bf16 %v844, %v843
      %v869 = vpack.c.bf16 %v846, %v845
      %v870 = vpack.c.bf16 %v848, %v847
      %v871 = vpack.c.bf16 %v850, %v849
      %v872 = vpack.c.bf16 %v852, %v851
      %v873 = vpack.c.bf16 %v854, %v853
      %v874 = vpack.c.bf16 %v856, %v855
      %v875 = vpack.c.bf16 %v858, %v857
      %v876 = vpack.c.bf16 %v860, %v859
      %v893 = vunpack.c.l.b16 %v861
      %v894 = vunpack.c.h.b16 %v861
      %v895 = vunpack.c.l.b16 %v862
      %v896 = vunpack.c.h.b16 %v862
      %v897 = vunpack.c.l.b16 %v863
      %v898 = vunpack.c.h.b16 %v863
      %v899 = vunpack.c.l.b16 %v864
      %v900 = vunpack.c.h.b16 %v864
      %v901 = vunpack.c.l.b16 %v865
      %v902 = vunpack.c.h.b16 %v865
      %v903 = vunpack.c.l.b16 %v866
      %v904 = vunpack.c.h.b16 %v866
      %v905 = vunpack.c.l.b16 %v867
      %v906 = vunpack.c.h.b16 %v867
      %v907 = vunpack.c.l.b16 %v868
      %v908 = vunpack.c.h.b16 %v868
      %v909 = vunpack.c.l.b16 %v869
      %v910 = vunpack.c.h.b16 %v869
      %v911 = vunpack.c.l.b16 %v870
      %v912 = vunpack.c.h.b16 %v870
      %v913 = vunpack.c.l.b16 %v871
      %v914 = vunpack.c.h.b16 %v871
      %v915 = vunpack.c.l.b16 %v872
      %v916 = vunpack.c.h.b16 %v872
      %v917 = vunpack.c.l.b16 %v873
      %v918 = vunpack.c.h.b16 %v873
      %v919 = vunpack.c.l.b16 %v874
      %v920 = vunpack.c.h.b16 %v874
      %v921 = vunpack.c.l.b16 %v875
      %v922 = vunpack.c.h.b16 %v875
      %v923 = vunpack.c.l.b16 %v876
      %v924 = vunpack.c.h.b16 %v876
      %v925 = vpack.c.b16 %v893, %v893
      %v926 = vpack.c.b16 %v894, %v894
      %v927 = vpack.c.b16 %v895, %v895
      %v928 = vpack.c.b16 %v896, %v896
      %v929 = vpack.c.b16 %v897, %v897
      %v930 = vpack.c.b16 %v898, %v898
      %v931 = vpack.c.b16 %v899, %v899
      %v932 = vpack.c.b16 %v900, %v900
      %v933 = vpack.c.b16 %v901, %v901
      %v934 = vpack.c.b16 %v902, %v902
      %v935 = vpack.c.b16 %v903, %v903
      %v936 = vpack.c.b16 %v904, %v904
      %v937 = vpack.c.b16 %v905, %v905
      %v938 = vpack.c.b16 %v906, %v906
      %v939 = vpack.c.b16 %v907, %v907
      %v940 = vpack.c.b16 %v908, %v908
      %v941 = vpack.c.b16 %v909, %v909
      %v942 = vpack.c.b16 %v910, %v910
      %v943 = vpack.c.b16 %v911, %v911
      %v944 = vpack.c.b16 %v912, %v912
      %v945 = vpack.c.b16 %v913, %v913
      %v946 = vpack.c.b16 %v914, %v914
      %v947 = vpack.c.b16 %v915, %v915
      %v948 = vpack.c.b16 %v916, %v916
      %v949 = vpack.c.b16 %v917, %v917
      %v950 = vpack.c.b16 %v918, %v918
      %v951 = vpack.c.b16 %v919, %v919
      %v952 = vpack.c.b16 %v920, %v920
      %v953 = vpack.c.b16 %v921, %v921
      %v954 = vpack.c.b16 %v922, %v922
      %v955 = vpack.c.b16 %v923, %v923
      %v956 = vpack.c.b16 %v924, %v924
      %989 = vst [vmem:[%s267] sm:$0xf] %v925
      %990 = vst [vmem:[%s267 + $0x4] sm:$0xf] %v926
      %991 = vst [vmem:[%s267 + $0x8] sm:$0xf] %v927
      %992 = vst [vmem:[%s267 + $0xc] sm:$0xf] %v928
      %993 = vst [vmem:[%s267 + $0x10] sm:$0xf] %v929
      %994 = vst [vmem:[%s267 + $0x14] sm:$0xf] %v930
      %995 = vst [vmem:[%s267 + $0x18] sm:$0xf] %v931
      %996 = vst [vmem:[%s267 + $0x1c] sm:$0xf] %v932
      %997 = vst [vmem:[%s267 + $0x20] sm:$0xf] %v933
      %998 = vst [vmem:[%s267 + $0x24] sm:$0xf] %v934
      %999 = vst [vmem:[%s267 + $0x28] sm:$0xf] %v935
      %1000 = vst [vmem:[%s267 + $0x2c] sm:$0xf] %v936
      %1001 = vst [vmem:[%s267 + $0x30] sm:$0xf] %v937
      %1002 = vst [vmem:[%s267 + $0x34] sm:$0xf] %v938
      %1003 = vst [vmem:[%s267 + $0x38] sm:$0xf] %v939
      %1004 = vst [vmem:[%s267 + $0x3c] sm:$0xf] %v940
      %1005 = vst [vmem:[%s267 + $0x40] sm:$0xf] %v941
      %1006 = vst [vmem:[%s267 + $0x44] sm:$0xf] %v942
      %1007 = vst [vmem:[%s267 + $0x48] sm:$0xf] %v943
      %1008 = vst [vmem:[%s267 + $0x4c] sm:$0xf] %v944
      %1009 = vst [vmem:[%s267 + $0x50] sm:$0xf] %v945
      %1010 = vst [vmem:[%s267 + $0x54] sm:$0xf] %v946
      %1011 = vst [vmem:[%s267 + $0x58] sm:$0xf] %v947
      %1012 = vst [vmem:[%s267 + $0x5c] sm:$0xf] %v948
      %1013 = vst [vmem:[%s267 + $0x60] sm:$0xf] %v949
      %1014 = vst [vmem:[%s267 + $0x64] sm:$0xf] %v950
      %1015 = vst [vmem:[%s267 + $0x68] sm:$0xf] %v951
      %1016 = vst [vmem:[%s267 + $0x6c] sm:$0xf] %v952
      %1017 = vst [vmem:[%s267 + $0x70] sm:$0xf] %v953
      %1018 = vst [vmem:[%s267 + $0x74] sm:$0xf] %v954
      %1019 = vst [vmem:[%s267 + $0x78] sm:$0xf] %v955
      %1020 = vst [vmem:[%s267 + $0x7c] sm:$0xf] %v956
      %s1021 = smul.u32 32, %s19
      %p1022 = scmp.lt.s32.totalorder %s1021, 255
      %s1023 = scalar_select %p1022, %s1021, 255
      %p1024 = scmp.lt.s32.totalorder %s20, 0
      %s1025 = scalar_select %p1024, %s20, 0
      %s1026 = sadd.s32 %s1025, %s1023
      %s1027 = smul.addr %s1026, 4
      %s1028 = scalar_lea.vmem %s4, %s1027
      // Predicated region
      $region37: #{_stem.1} parent=35 // pred_check
        %p1029 = pneg %p151
      $region38: #{_stem.1} parent=35 // pred_check_branch
        %1031 = sbr.rel (%p1029) target = $region40
      $region39: #{_stem.1} parent=35 // pred_region
        %s1032 = smul.u32 32, %s19
      $region40: #{_stem.1} parent=35 // pred_fallthru
        _
    $region36: #{_stem.1} parent=5 // pred_fallthru
      _
    %p1033 = scmp.le.s32.totalorder 2, %s10
    // Predicated region
    $region41: #{_stem.1} parent=5 // pred_check
      %p1034 = pneg %p1033
    $region42: #{_stem.1} parent=5 // pred_check_branch
      %1036 = sbr.rel (%p1034) target = $region44
    $region43: #{_stem.1} parent=5 // pred_region
      %s1037 = ssub.s32 %s10, 2
      // Predicated region
      $region45: #{_stem.1} parent=43 // pred_check
        %p1038 = pneg %p157
      $region46: #{_stem.1} parent=43 // pred_check_branch
        %1040 = sbr.rel (%p1038) target = $region48
      $region47: #{_stem.1} parent=43 // pred_region
        %s1041 = smul.u32 32, %s21
        %p1042 = scmp.lt.s32.totalorder %s1041, 255
        %s1043 = scalar_select %p1042, %s1041, 255
        %p1044 = scmp.lt.s32.totalorder %s22, 0
        %s1045 = scalar_select %p1044, %s22, 0
        %s1046 = sadd.s32 %s1045, %s1043
        %s1047 = smul.addr %s1046, 4
        %s1048 = scalar_lea.vmem %s4, %s1047
      $region48: #{_stem.1} parent=43 // pred_fallthru
        _
    $region44: #{_stem.1} parent=5 // pred_fallthru
      _
  $region6: #{_stem.1} parent=0 // loop_footer
    %s14 = sadd.s32 1, %s10
  $region7: #{_stem.1} parent=0 // loop_footer_branch
    %9 = sbr.rel target = $region3
  $region8: #{_stem.1} parent=0 // loop_exit
    _

</llo_original>
